<compile_context>
chip_gen: v5e
topology: v5e:2x2
jax: 0.10.0
libtpu: 0.0.40
codegen_flags: <defaults>
</compile_context>

<pallas_src>
import jax
import jax.numpy as jnp
from jax.experimental import pallas as pl
from jax.experimental.pallas import tpu as pltpu

BN_EPS = 1e-5
LANE = 128
SUBLANE = 8
MIN_TN = 256   # below this, per-grid-step overhead / narrow MXU issues dominate


def _round_up(x, m):
    return ((x + m - 1) // m) * m


def _pad2(a, rows, cols):
    return jnp.pad(a, ((0, rows - a.shape[0]), (0, cols - a.shape[1])))


def _vmem_budget_bytes():
    """~3/4 of this chip's per-core VMEM (v5e/v6e: 128 MiB, v7x: 64 MiB/TC)."""
    cap = None
    try:
        cap = getattr(pltpu.get_tpu_info(), "vmem_capacity_bytes", None)
    except Exception:
        cap = None
    if not cap:
        cap = 64 * 1024 * 1024           # conservative default (v7x per-TC)
    return int(cap) * 3 // 4


# ----------------------------------------------------------------------------
# One-time parameter preparation (hoisted out of the per-call forward path).
# ----------------------------------------------------------------------------
def prepare_params(params, *, compute_dtype=jnp.bfloat16, hidden_tile="auto",
                   vmem_budget=None):
    """Fold eval-mode BatchNorm (and b1) into the first linear, pick the tiling
    mode, and cast/pad weights ONCE:
        (h@W1 + b1 - mean) * gamma*rsqrt(var+eps) + beta
          == h @ (W1*s) + ((b1-mean)*s + beta),  s = gamma*rsqrt(var+eps)
    If the hidden dim will be K-tiled, its padding is zero so clipped K-tiles
    contribute exactly zero (ReLU(0+0)=0 and zero W2 rows).
    """
    D = params["w1"].shape[0]
    C = params["w2"].shape[1]
    budget = _vmem_budget_bytes() if vmem_budget is None else int(vmem_budget)
    itemsize = jnp.dtype(compute_dtype).itemsize

    inv_std = jax.lax.rsqrt(params["var"] + BN_EPS)          # (1, D)
    scale = params["gamma"] * inv_std
    w1f = params["w1"] * scale                               # scale output cols
    b1f = (params["b1"] - params["mean"]) * scale + params["beta"]

    if hidden_tile == "auto":
        # Weights stay fully VMEM-resident if (even double-buffered) they use
        # at most ~half the budget; otherwise tile the hidden dim of W1/W2.
        if 2 * (D * D + D * C) * itemsize <= budget // 2:
            hidden_tile = None
        else:
            kt = LANE
            while (2 * kt < _round_up(D, LANE)
                   and 2 * (D * 2 * kt + 2 * kt * C) * itemsize <= budget // 4):
                kt *= 2
            hidden_tile = kt

    Dh = D if hidden_tile is None else _round_up(D, hidden_tile)
    return dict(
        w1=_pad2(w1f, D, Dh).astype(compute_dtype),           # [D, Dh]
        b1=_pad2(b1f, 1, Dh).astype(jnp.float32),             # [1, Dh] f32 epilogue
        w2=_pad2(params["w2"], Dh, C).astype(compute_dtype),   # [Dh, C]
        b2=params["b2"].astype(jnp.float32),                   # [1, C]
        D=D, Dh=Dh, C=C, hidden_tile=hidden_tile,
        compute_dtype=jnp.dtype(compute_dtype), vmem_budget=budget,
    )


# ----------------------------------------------------------------------------
# Kernels
# ----------------------------------------------------------------------------
def _hope_kernel_resident(h_ref, w1_ref, b1_ref, w2_ref, b2_ref, out_ref):
    # [TN, D] @ [D, Dh] -> f32 acc; + bias; ReLU (Dropout p=0.5 eval == identity)
    y = jnp.dot(h_ref[...], w1_ref[...], preferred_element_type=jnp.float32)
    y = jnp.maximum(y + b1_ref[...], 0.0)
    # [TN, Dh] @ [Dh, C] + bias
    out_ref[...] = (jnp.dot(y.astype(w2_ref.dtype), w2_ref[...],
                            preferred_element_type=jnp.float32)
                    + b2_ref[...]).astype(out_ref.dtype)


def _hope_kernel_ktiled(h_ref, w1_ref, b1_ref, w2_ref, b2_ref, out_ref, acc_ref):
    # Hidden dim tiled: per K-tile j, compute y_j = ReLU(h @ W1[:, j] + b1[j])
    # and accumulate y_j @ W2[j, :] into an f32 VMEM scratch.
    j = pl.program_id(1)

    @pl.when(j == 0)
    def _():
        acc_ref[...] = jnp.zeros_like(acc_ref)

    y = jnp.dot(h_ref[...], w1_ref[...], preferred_element_type=jnp.float32)
    y = jnp.maximum(y + b1_ref[...], 0.0)
    acc_ref[...] += jnp.dot(y.astype(w2_ref.dtype), w2_ref[...],
                            preferred_element_type=jnp.float32)

    @pl.when(j == pl.num_programs(1) - 1)
    def _():
        out_ref[...] = (acc_ref[...] + b2_ref[...]).astype(out_ref.dtype)


# ----------------------------------------------------------------------------
# Forward
# ----------------------------------------------------------------------------
def hope_forward(h, prep, *, tile_n=512, out_dtype=jnp.float32):
    """h: [N, D].  prep: output of prepare_params()."""
    N, D = h.shape
    assert D == prep["D"], (D, prep["D"])
    C, Dh, kt = prep["C"], prep["Dh"], prep["hidden_tile"]
    cdt = prep["compute_dtype"]
    itemsize = cdt.itemsize
    budget = prep["vmem_budget"]

    h = h.astype(cdt)                     # no activation padding / reshaping

    # ---- batch tile size ----------------------------------------------------
    TN = min(tile_n, _round_up(N, SUBLANE))
    # Give the batch grid >= 2 tiles when there's enough work to split, so
    # ("parallel",) can use both TensorCores on v7x.
    if N > 2 * MIN_TN and pl.cdiv(N, TN) < 2:
        TN = _round_up(pl.cdiv(N, 2), SUBLANE)

    kd = Dh if kt is None else kt         # hidden extent seen per kernel step

    def vmem_need(tn):
        w = 2 * (D * kd + kd * C) * itemsize + 2 * (kd + C) * 4   # weights + biases (worst-case 2x buffered)
        act = 2 * tn * D * itemsize + 2 * tn * C * 4              # h / out row tiles (double-buffered)
        y = tn * kd * (4 + itemsize)                              # f32 intermediate + low-precision copy
        acc = tn * C * 4 if kt is not None else 0                 # accumulator scratch
        return w + act + y + acc

    floor = min(MIN_TN, _round_up(N, SUBLANE))
    while TN > floor and vmem_need(TN) > budget:
        TN = max(floor, _round_up(TN // 2, SUBLANE))

    n_tiles = pl.cdiv(N, TN)
    vmem_limit = int(min(max(vmem_need(TN) * 5 // 4, 32 * 1024 * 1024),
                         budget * 4 // 3))

    flops = 2 * N * Dh * (D + C)
    bytes_accessed = ((N * D + D * Dh + Dh * C) * itemsize
                      + (Dh + C) * 4 + N * C * jnp.dtype(out_dtype).itemsize)
    cost = pl.CostEstimate(flops=flops, transcendentals=0,
                           bytes_accessed=bytes_accessed)
    out_shape = jax.ShapeDtypeStruct((N, C), out_dtype)

    def call(single_buffer_weights):
        def const_spec(shape, index_map):
            # Constant-index operand: a single VMEM buffer is enough.
            if single_buffer_weights and hasattr(pl, "Buffered"):
                return pl.BlockSpec(shape, index_map,
                                    pipeline_mode=pl.Buffered(1))
            return pl.BlockSpec(shape, index_map)

        if kt is None:
            grid = (n_tiles,)
            in_specs = [
                pl.BlockSpec((TN, D), lambda i: (i, 0)),       # h row-tile (pipelined)
                const_spec((D, Dh), lambda i: (0, 0)),         # W1' resident
                const_spec((1, Dh), lambda i: (0, 0)),         # b1' resident
                const_spec((Dh, C), lambda i: (0, 0)),         # W2  resident
                const_spec((1, C), lambda i: (0, 0)),          # b2  resident
            ]
            out_specs = pl.BlockSpec((TN, C), lambda i: (i, 0))
            kernel = _hope_kernel_resident
            scratch = []
            dimsem = ("parallel",)
        else:
            grid = (n_tiles, Dh // kt)                          # reduction axis last
            in_specs = [
                pl.BlockSpec((TN, D), lambda i, j: (i, 0)),     # h resident over j
                pl.BlockSpec((D, kt), lambda i, j: (0, j)),     # W1' column tile
                pl.BlockSpec((1, kt), lambda i, j: (0, j)),     # b1' tile
                pl.BlockSpec((kt, C), lambda i, j: (j, 0)),     # W2 row tile
                const_spec((1, C), lambda i, j: (0, 0)),        # b2 resident
            ]
            out_specs = pl.BlockSpec((TN, C), lambda i, j: (i, 0))
            kernel = _hope_kernel_ktiled
            scratch = [pltpu.VMEM((TN, C), jnp.float32)]
            dimsem = ("parallel", "arbitrary")

        return pl.pallas_call(
            kernel,
            out_shape=out_shape,
            grid=grid,
            in_specs=in_specs,
            out_specs=out_specs,
            scratch_shapes=scratch,
            compiler_params=pltpu.CompilerParams(
                dimension_semantics=dimsem,
                vmem_limit_bytes=vmem_limit),
            cost_estimate=cost,
        )(h, prep["w1"], prep["b1"], prep["w2"], prep["b2"])

    try:
        return call(True)
    except Exception:
        # pipeline_mode=pl.Buffered(1) unsupported on this jax build:
        # fall back to default (double-buffered) resident operands.
        return call(False)


# ----------------------------------------------------------------------------
# Parameters / reference (pure JAX) for the demo
# ----------------------------------------------------------------------------
def init_params(key, embedding_dim, x_dim, num_classes):
    D = embedding_dim + x_dim
    k1, k2, k3, k4, k5, k6 = jax.random.split(key, 6)
    lim = 1.0 / jnp.sqrt(D)
    w1 = jax.random.uniform(k1, (D, D), jnp.float32, -lim, lim)   # [in, out]
    b1 = jax.random.uniform(k2, (1, D), jnp.float32, -lim, lim)
    w2 = jax.random.uniform(k3, (D, num_classes), jnp.float32, -lim, lim)
    b2 = jax.random.uniform(k4, (1, num_classes), jnp.float32, -lim, lim)
    gamma = jnp.ones((1, D), jnp.float32)
    beta = jnp.zeros((1, D), jnp.float32)
    mean = 0.1 * jax.random.normal(k5, (1, D), jnp.float32)
    var = jnp.abs(jax.random.normal(k6, (1, D), jnp.float32)) + 0.5
    return dict(w1=w1, b1=b1, gamma=gamma, beta=beta, mean=mean, var=var,
                w2=w2, b2=b2)


def hope_reference(h, p):
    y = h @ p["w1"] + p["b1"]
    y = (y - p["mean"]) * jax.lax.rsqrt(p["var"] + BN_EPS) * p["gamma"] + p["beta"]
    y = jnp.maximum(y, 0.0)
    return y @ p["w2"] + p["b2"]


if __name__ == "__main__":
    # Small shapes consistent with the module: embedding_dim=16, x_dim=16 -> D=32
    num_embeddings, embedding_dim, num_classes, beta, x_dim = 64, 16, 8, 0.5, 16
    N = 8
    D = embedding_dim + x_dim

    key = jax.random.PRNGKey(0)
    kp, kh = jax.random.split(key)
    params = init_params(kp, embedding_dim, x_dim, num_classes)
    h = jax.random.normal(kh, (N, D), jnp.float32)
    ref = hope_reference(h, params)

    # 1) f32 MXU path, fully VMEM-resident weights -> tight tolerance.
    prep32 = prepare_params(params, compute_dtype=jnp.float32)
    out32 = jax.block_until_ready(hope_forward(h, prep32))
    assert out32.shape == (N, num_classes)
    assert jnp.allclose(out32, ref, atol=2e-3, rtol=2e-3), "f32 mismatch vs reference"

    # 2) bf16 MXU path (default: ~2x+ MXU throughput) -> loose tolerance.
    prep16 = prepare_params(params)
    out16 = jax.block_until_ready(hope_forward(h, prep16))
    assert out16.shape == (N, num_classes)
    assert jnp.allclose(out16, ref, atol=3e-2, rtol=3e-2), "bf16 mismatch vs reference"

    # 3) Hidden-dim (K) tiled accumulator fallback (exercised at D=256, f32).
    ed2, xd2 = 128, 128
    p2 = init_params(jax.random.PRNGKey(1), ed2, xd2, num_classes)
    h2 = jax.random.normal(jax.random.PRNGKey(2), (N, ed2 + xd2), jnp.float32)
    prep_kt = prepare_params(p2, compute_dtype=jnp.float32, hidden_tile=128)
    out_kt = jax.block_until_ready(hope_forward(h2, prep_kt))
    assert out_kt.shape == (N, num_classes)
    assert jnp.allclose(out_kt, hope_reference(h2, p2), atol=5e-3, rtol=5e-3), \
        "k-tiled mismatch vs reference"

    print("KERNEL_OK")
</pallas_src>

<mosaic_0001>
module attributes {stable_mosaic.version = 11 : i64} {
  func.func @_hope_kernel_resident(%arg0: i32, %arg1: memref<8x32xf32, #tpu.memory_space<vmem>>, %arg2: memref<32x32xf32, #tpu.memory_space<vmem>>, %arg3: memref<1x32xf32, #tpu.memory_space<vmem>>, %arg4: memref<32x8xf32, #tpu.memory_space<vmem>>, %arg5: memref<1x8xf32, #tpu.memory_space<vmem>>, %arg6: memref<8x8xf32, #tpu.memory_space<vmem>>) attributes {dimension_semantics = [#tpu.dimension_semantics<parallel>], iteration_bounds = array<i64: 1>, scalar_prefetch = 0 : i64, scratch_operands = 0 : i64, tpu.core_type = #tpu.core_type<tc>, window_params = [{transform_indices = @transform_0, window_bounds = array<i64: 8, 32>}, {pipeline_mode = #tpu.pipeline_mode<synchronous>, transform_indices = @transform_1, window_bounds = array<i64: 32, 32>}, {pipeline_mode = #tpu.pipeline_mode<synchronous>, transform_indices = @transform_2, window_bounds = array<i64: 1, 32>}, {pipeline_mode = #tpu.pipeline_mode<synchronous>, transform_indices = @transform_3, window_bounds = array<i64: 32, 8>}, {pipeline_mode = #tpu.pipeline_mode<synchronous>, transform_indices = @transform_4, window_bounds = array<i64: 1, 8>}, {transform_indices = @transform_5, window_bounds = array<i64: 8, 8>}]} {
    %c0 = arith.constant 0 : index
    %c0_0 = arith.constant 0 : index
    %0 = vector.load %arg1[%c0, %c0_0] : memref<8x32xf32, #tpu.memory_space<vmem>>, vector<8x32xf32>
    %c0_1 = arith.constant 0 : index
    %c0_2 = arith.constant 0 : index
    %1 = vector.load %arg2[%c0_1, %c0_2] : memref<32x32xf32, #tpu.memory_space<vmem>>, vector<32x32xf32>
    %cst = arith.constant dense<0.000000e+00> : vector<8x32xf32>
    %2 = tpu.matmul %0, %1, %cst {dimension_numbers = #tpu.dot_dimension_numbers<[1], [0], [0], [1], [0, 0, 1, 1], [], []>} : vector<8x32xf32>, vector<32x32xf32>, vector<8x32xf32> -> vector<8x32xf32>
    %c0_3 = arith.constant 0 : index
    %c0_4 = arith.constant 0 : index
    %3 = vector.load %arg3[%c0_3, %c0_4] : memref<1x32xf32, #tpu.memory_space<vmem>>, vector<1x32xf32>
    %4 = vector.broadcast %3 : vector<1x32xf32> to vector<8x32xf32>
    %5 = arith.addf %2, %4 : vector<8x32xf32>
    %cst_5 = arith.constant 0.000000e+00 : f32
    %6 = vector.broadcast %cst_5 : f32 to vector<8x32xf32>
    %7 = arith.maximumf %5, %6 : vector<8x32xf32>
    %c0_6 = arith.constant 0 : index
    %c0_7 = arith.constant 0 : index
    %8 = vector.load %arg4[%c0_6, %c0_7] : memref<32x8xf32, #tpu.memory_space<vmem>>, vector<32x8xf32>
    %cst_8 = arith.constant dense<0.000000e+00> : vector<8x8xf32>
    %9 = tpu.matmul %7, %8, %cst_8 {dimension_numbers = #tpu.dot_dimension_numbers<[1], [0], [0], [1], [0, 0, 1, 1], [], []>} : vector<8x32xf32>, vector<32x8xf32>, vector<8x8xf32> -> vector<8x8xf32>
    %c0_9 = arith.constant 0 : index
    %c0_10 = arith.constant 0 : index
    %10 = vector.load %arg5[%c0_9, %c0_10] : memref<1x8xf32, #tpu.memory_space<vmem>>, vector<1x8xf32>
    %11 = vector.broadcast %10 : vector<1x8xf32> to vector<8x8xf32>
    %12 = arith.addf %9, %11 : vector<8x8xf32>
    %c0_11 = arith.constant 0 : index
    %c0_12 = arith.constant 0 : index
    %13 = vector.load %arg6[%c0_11, %c0_12] : memref<8x8xf32, #tpu.memory_space<vmem>>, vector<8x8xf32>
    tpu.vector_store %arg6[%c0_11, %c0_12], %12 {strides = array<i32>} : memref<8x8xf32, #tpu.memory_space<vmem>>, vector<8x8xf32>,
    return
  }
  func.func @transform_0(%arg0: i32) -> (i32, i32) {
    %c0_i32 = arith.constant 0 : i32
    %c0_i32_0 = arith.constant 0 : i32
    return %arg0, %c0_i32 : i32, i32
  }
  func.func @transform_1(%arg0: i32) -> (i32, i32) {
    %c0_i32 = arith.constant 0 : i32
    %c0_i32_0 = arith.constant 0 : i32
    %c0_i32_1 = arith.constant 0 : i32
    return %c0_i32, %c0_i32_0 : i32, i32
  }
  func.func @transform_2(%arg0: i32) -> (i32, i32) {
    %c0_i32 = arith.constant 0 : i32
    %c0_i32_0 = arith.constant 0 : i32
    %c0_i32_1 = arith.constant 0 : i32
    return %c0_i32, %c0_i32_0 : i32, i32
  }
  func.func @transform_3(%arg0: i32) -> (i32, i32) {
    %c0_i32 = arith.constant 0 : i32
    %c0_i32_0 = arith.constant 0 : i32
    %c0_i32_1 = arith.constant 0 : i32
    return %c0_i32, %c0_i32_0 : i32, i32
  }
  func.func @transform_4(%arg0: i32) -> (i32, i32) {
    %c0_i32 = arith.constant 0 : i32
    %c0_i32_0 = arith.constant 0 : i32
    %c0_i32_1 = arith.constant 0 : i32
    return %c0_i32, %c0_i32_0 : i32, i32
  }
  func.func @transform_5(%arg0: i32) -> (i32, i32) {
    %c0_i32 = arith.constant 0 : i32
    %c0_i32_0 = arith.constant 0 : i32
    return %arg0, %c0_i32 : i32, i32
  }
}

module attributes {stable_mosaic.version = 11 : i64} {
  func.func @_hope_kernel_resident(%arg0: i32, %arg1: memref<8x32xf32, #tpu.memory_space<vmem>>, %arg2: memref<32x32xf32, #tpu.memory_space<vmem>>, %arg3: memref<1x32xf32, #tpu.memory_space<vmem>>, %arg4: memref<32x8xf32, #tpu.memory_space<vmem>>, %arg5: memref<1x8xf32, #tpu.memory_space<vmem>>, %arg6: memref<8x8xf32, #tpu.memory_space<vmem>>) attributes {dimension_semantics = [#tpu.dimension_semantics<parallel>], iteration_bounds = array<i64: 1>, scalar_prefetch = 0 : i64, scratch_operands = 0 : i64, tpu.core_type = #tpu.core_type<tc>, window_params = [{transform_indices = @transform_0, window_bounds = array<i64: 8, 32>}, {pipeline_mode = #tpu.pipeline_mode<synchronous>, transform_indices = @transform_1, window_bounds = array<i64: 32, 32>}, {pipeline_mode = #tpu.pipeline_mode<synchronous>, transform_indices = @transform_2, window_bounds = array<i64: 1, 32>}, {pipeline_mode = #tpu.pipeline_mode<synchronous>, transform_indices = @transform_3, window_bounds = array<i64: 32, 8>}, {pipeline_mode = #tpu.pipeline_mode<synchronous>, transform_indices = @transform_4, window_bounds = array<i64: 1, 8>}, {transform_indices = @transform_5, window_bounds = array<i64: 8, 8>}]} {
    %c0 = arith.constant 0 : index
    %c0_0 = arith.constant 0 : index
    %0 = vector.load %arg1[%c0, %c0_0] : memref<8x32xf32, #tpu.memory_space<vmem>>, vector<8x32xf32>
    %c0_1 = arith.constant 0 : index
    %c0_2 = arith.constant 0 : index
    %1 = vector.load %arg2[%c0_1, %c0_2] : memref<32x32xf32, #tpu.memory_space<vmem>>, vector<32x32xf32>
    %cst = arith.constant dense<0.000000e+00> : vector<8x32xf32>
    %2 = tpu.matmul %0, %1, %cst {dimension_numbers = #tpu.dot_dimension_numbers<[1], [0], [0], [1], [0, 0, 1, 1], [], []>} : vector<8x32xf32>, vector<32x32xf32>, vector<8x32xf32> -> vector<8x32xf32>
    %c0_3 = arith.constant 0 : index
    %c0_4 = arith.constant 0 : index
    %3 = vector.load %arg3[%c0_3, %c0_4] : memref<1x32xf32, #tpu.memory_space<vmem>>, vector<1x32xf32>
    %4 = vector.broadcast %3 : vector<1x32xf32> to vector<8x32xf32>
    %5 = arith.addf %2, %4 : vector<8x32xf32>
    %cst_5 = arith.constant 0.000000e+00 : f32
    %6 = vector.broadcast %cst_5 : f32 to vector<8x32xf32>
    %7 = arith.maximumf %5, %6 : vector<8x32xf32>
    %c0_6 = arith.constant 0 : index
    %c0_7 = arith.constant 0 : index
    %8 = vector.load %arg4[%c0_6, %c0_7] : memref<32x8xf32, #tpu.memory_space<vmem>>, vector<32x8xf32>
    %cst_8 = arith.constant dense<0.000000e+00> : vector<8x8xf32>
    %9 = tpu.matmul %7, %8, %cst_8 {dimension_numbers = #tpu.dot_dimension_numbers<[1], [0], [0], [1], [0, 0, 1, 1], [], []>} : vector<8x32xf32>, vector<32x8xf32>, vector<8x8xf32> -> vector<8x8xf32>
    %c0_9 = arith.constant 0 : index
    %c0_10 = arith.constant 0 : index
    %10 = vector.load %arg5[%c0_9, %c0_10] : memref<1x8xf32, #tpu.memory_space<vmem>>, vector<1x8xf32>
    %11 = vector.broadcast %10 : vector<1x8xf32> to vector<8x8xf32>
    %12 = arith.addf %9, %11 : vector<8x8xf32>
    %c0_11 = arith.constant 0 : index
    %c0_12 = arith.constant 0 : index
    %13 = vector.load %arg6[%c0_11, %c0_12] : memref<8x8xf32, #tpu.memory_space<vmem>>, vector<8x8xf32>
    tpu.vector_store %arg6[%c0_11, %c0_12], %12 {strides = array<i32>} : memref<8x8xf32, #tpu.memory_space<vmem>>, vector<8x8xf32>,
    return
  }
  func.func @transform_0(%arg0: i32) -> (i32, i32) {
    %c0_i32 = arith.constant 0 : i32
    %c0_i32_0 = arith.constant 0 : i32
    return %arg0, %c0_i32 : i32, i32
  }
  func.func @transform_1(%arg0: i32) -> (i32, i32) {
    %c0_i32 = arith.constant 0 : i32
    %c0_i32_0 = arith.constant 0 : i32
    %c0_i32_1 = arith.constant 0 : i32
    return %c0_i32, %c0_i32_0 : i32, i32
  }
  func.func @transform_2(%arg0: i32) -> (i32, i32) {
    %c0_i32 = arith.constant 0 : i32
    %c0_i32_0 = arith.constant 0 : i32
    %c0_i32_1 = arith.constant 0 : i32
    return %c0_i32, %c0_i32_0 : i32, i32
  }
  func.func @transform_3(%arg0: i32) -> (i32, i32) {
    %c0_i32 = arith.constant 0 : i32
    %c0_i32_0 = arith.constant 0 : i32
    %c0_i32_1 = arith.constant 0 : i32
    return %c0_i32, %c0_i32_0 : i32, i32
  }
  func.func @transform_4(%arg0: i32) -> (i32, i32) {
    %c0_i32 = arith.constant 0 : i32
    %c0_i32_0 = arith.constant 0 : i32
    %c0_i32_1 = arith.constant 0 : i32
    return %c0_i32, %c0_i32_0 : i32, i32
  }
  func.func @transform_5(%arg0: i32) -> (i32, i32) {
    %c0_i32 = arith.constant 0 : i32
    %c0_i32_0 = arith.constant 0 : i32
    return %arg0, %c0_i32 : i32, i32
  }
}

</mosaic_0001>

<llo_original>
// kernel: tpu_custom_call.1
$region0: #{tpu_custom_call.1}
  #allocation0 [shape = 'u32[]', space=smem, size = 0x4, offset = 0x4, fixed_abs, tag = 'smem constant byte address 0x4 - core index']
  #allocation1 [shape = 'u32[72,128]{1,0:T(1,128)}', space=vmem, size = 0x9000, scoped, tag = 'internal scratch']
  %s0 = inlined_call_operand.vmem [shape: f32[8,32], index: 0, kind: input, shape index: {}]
  %s1 = inlined_call_operand.vmem [shape: f32[32,32], index: 1, kind: input, shape index: {}]
  %s2 = inlined_call_operand.vmem [shape: f32[1,32], index: 2, kind: input, shape index: {}]
  %s3 = inlined_call_operand.vmem [shape: f32[32,8], index: 3, kind: input, shape index: {}]
  %s4 = inlined_call_operand.vmem [shape: f32[1,8], index: 4, kind: input, shape index: {}]
  %s5 = inlined_call_operand.hbm [shape: f32[8,8], index: 5, kind: output, shape index: {}]
  %s6 = sld [smem:[#allocation0]]
  $region30: #{tpu_custom_call.1} parent=0
    _
  %s8 = ssub.s32 1, %s6
  %s9 = scalar_select 0, %s8, %s6
  $region1: #{tpu_custom_call.1} parent=0
    #allocation2 [shape = 'u8[4096]{0}', space=vmem, size = 0x1000, scoped, tag = 'output window, operand 0, single buffered']
    #allocation3 [shape = 's32[1]{0}', space=sflag, size = 0x4, scoped, tag = 'scoped memory for tpu_custom_call.1']
    %10 = vsyncpa [#allocation3], 0
    // Predicated region
    $region2: #{tpu_custom_call.1} parent=1 // pred_check
      _
    $region3: #{tpu_custom_call.1} parent=1 // pred_check_branch
      %12 = sbr.rel (0) target = $region5
    $region4: #{tpu_custom_call.1} parent=1 // pred_region
      _
    $region5: #{tpu_custom_call.1} parent=1 // pred_fallthru
      _
    // Predicated region
    $region6: #{tpu_custom_call.1} parent=1 // pred_check
      _
    $region7: #{tpu_custom_call.1} parent=1 // pred_check_branch
      %14 = sbr.rel (0) target = $region9
    $region8: #{tpu_custom_call.1} parent=1 // pred_region
      _
    $region9: #{tpu_custom_call.1} parent=1 // pred_fallthru
      _
    // Predicated region
    $region10: #{tpu_custom_call.1} parent=1 // pred_check
      _
    $region11: #{tpu_custom_call.1} parent=1 // pred_check_branch
      %16 = sbr.rel (0) target = $region13
    $region12: #{tpu_custom_call.1} parent=1 // pred_region
      _
    $region13: #{tpu_custom_call.1} parent=1 // pred_fallthru
      _
    // Predicated region
    $region14: #{tpu_custom_call.1} parent=1 // pred_check
      _
    $region15: #{tpu_custom_call.1} parent=1 // pred_check_branch
      %18 = sbr.rel (0) target = $region17
    $region16: #{tpu_custom_call.1} parent=1 // pred_region
      _
    $region17: #{tpu_custom_call.1} parent=1 // pred_fallthru
      _
    // Predicated region
    $region18: #{tpu_custom_call.1} parent=1 // pred_check
      _
    $region19: #{tpu_custom_call.1} parent=1 // pred_check_branch
      %20 = sbr.rel (0) target = $region21
    $region20: #{tpu_custom_call.1} parent=1 // pred_region
      _
    $region21: #{tpu_custom_call.1} parent=1 // pred_fallthru
      _
    %v21 = vld [vmem:[%s0] sm:$0xff]
    %v22 = vld [vmem:[%s1] sm:$0xff]
    %v23 = vld [vmem:[%s1 + $0x8] sm:$0xff]
    %v24 = vld [vmem:[%s1 + $0x10] sm:$0xff]
    %v25 = vld [vmem:[%s1 + $0x18] sm:$0xff]
    %v26 = vld [vmem:[%s2] sm:$0x1]
    %v28 = vperm.slane %v26, 0
    %vm30 = vcmask 261120
    %v32 = vsel %vm30, %v21, 0
    %34 = vmatpush.msra.mxu0 0.0
    %35 = vmatpush.msra.mxu0 0.0
    %36 = vmatpush.msra.mxu0 0.0
    %37 = vmatpush.msra.mxu0 0.0
    %38 = vmatpush.msra.mxu0 0.0
    %39 = vmatpush.msra.mxu0 0.0
    %40 = vmatpush.msra.mxu0 0.0
    %41 = vmatpush.msra.mxu0 0.0
    %42 = vmatpush.msra.mxu0 0.0
    %43 = vmatpush.msra.mxu0 0.0
    %44 = vmatpush.msra.mxu0 0.0
    %45 = vmatpush.msra.mxu0 0.0
    %46 = vmatpush.msra.mxu0 %v25
    %47 = vmatpush.msra.mxu0 %v24
    %48 = vmatpush.msra.mxu0 %v23
    %49 = vmatpush.msra.mxu0 %v22
    %50 = vmatmul.f32.gmra.mxu0 %v32
    %v51 = vpop.f32.mrf.mxu0
    %v52 = vadd.f32 %v28, %v51
    %53 = vdwg.mxu0
    %v54 = vmax.f32 %v52, 0.0
    %v55 = vld [vmem:[%s3] sm:$0xff]
    %v56 = vld [vmem:[%s3 + $0x8] sm:$0xff]
    %v57 = vld [vmem:[%s3 + $0x10] sm:$0xff]
    %v58 = vld [vmem:[%s3 + $0x18] sm:$0xff]
    %v59 = vld [vmem:[%s4] sm:$0x1]
    %v61 = vperm.slane %v59, 0
    %v64 = vsel %vm30, %v54, 0
    %66 = vmatpush.msra.mxu0 0.0
    %67 = vmatpush.msra.mxu0 0.0
    %68 = vmatpush.msra.mxu0 0.0
    %69 = vmatpush.msra.mxu0 0.0
    %70 = vmatpush.msra.mxu0 0.0
    %71 = vmatpush.msra.mxu0 0.0
    %72 = vmatpush.msra.mxu0 0.0
    %73 = vmatpush.msra.mxu0 0.0
    %74 = vmatpush.msra.mxu0 0.0
    %75 = vmatpush.msra.mxu0 0.0
    %76 = vmatpush.msra.mxu0 0.0
    %77 = vmatpush.msra.mxu0 0.0
    %78 = vmatpush.msra.mxu0 %v58
    %79 = vmatpush.msra.mxu0 %v57
    %80 = vmatpush.msra.mxu0 %v56
    %81 = vmatpush.msra.mxu0 %v55
    %82 = vmatmul.f32.gmra.mxu0 %v64
    %v83 = vpop.f32.mrf.mxu0
    %v84 = vadd.f32 %v61, %v83
    %85 = vdwg.mxu0
    %vm86 = vcmask 64512
    %87 = vst.msk [vmem:[#allocation2] sm:$0xff] %vm86, %v84
    // Predicated region
    $region22: #{tpu_custom_call.1} parent=1 // pred_check
      _
    $region23: #{tpu_custom_call.1} parent=1 // pred_check_branch
      %89 = sbr.rel (0) target = $region25
    $region24: #{tpu_custom_call.1} parent=1 // pred_region
      %91 = vsyncadd [#allocation3], 0
      %s93 = sshll.u32 [#allocation2], 4
      %s94 = int_to_ptr.vmem [resolvable:$true] %s93
      %s95 = sshll.u32 %s5, 4
      %s96 = int_to_ptr.hbm [resolvable:$true] %s95
      %98 = dma.vmem_to_hbm [thread:$0]  %s94, 128, %s96, [#allocation3]
    $region25: #{tpu_custom_call.1} parent=1 // pred_fallthru
      _
    // Predicated region
    $region26: #{tpu_custom_call.1} parent=1 // pred_check
      _
    $region27: #{tpu_custom_call.1} parent=1 // pred_check_branch
      %100 = sbr.rel (0) target = $region29
    $region28: #{tpu_custom_call.1} parent=1 // pred_region
      %102 = dma.done [#allocation3], 128
    $region29: #{tpu_custom_call.1} parent=1 // pred_fallthru
      _
    %103 = vsyncpa [#allocation3], 1

// kernel: tpu_custom_call.1
$region0: #{tpu_custom_call.1}
  #allocation0 [shape = 'u32[]', space=smem, size = 0x4, offset = 0x4, fixed_abs, tag = 'smem constant byte address 0x4 - core index']
  #allocation1 [shape = 'u32[72,128]{1,0:T(1,128)}', space=vmem, size = 0x9000, scoped, tag = 'internal scratch']
  %s0 = inlined_call_operand.vmem [shape: f32[8,32], index: 0, kind: input, shape index: {}]
  %s1 = inlined_call_operand.vmem [shape: f32[32,32], index: 1, kind: input, shape index: {}]
  %s2 = inlined_call_operand.vmem [shape: f32[1,32], index: 2, kind: input, shape index: {}]
  %s3 = inlined_call_operand.vmem [shape: f32[32,8], index: 3, kind: input, shape index: {}]
  %s4 = inlined_call_operand.vmem [shape: f32[1,8], index: 4, kind: input, shape index: {}]
  %s5 = inlined_call_operand.hbm [shape: f32[8,8], index: 5, kind: output, shape index: {}]
  %s6 = sld [smem:[#allocation0]]
  $region30: #{tpu_custom_call.1} parent=0
    _
  %s8 = ssub.s32 1, %s6
  %s9 = scalar_select 0, %s8, %s6
  $region1: #{tpu_custom_call.1} parent=0
    #allocation2 [shape = 'u8[4096]{0}', space=vmem, size = 0x1000, scoped, tag = 'output window, operand 0, single buffered']
    #allocation3 [shape = 's32[1]{0}', space=sflag, size = 0x4, scoped, tag = 'scoped memory for tpu_custom_call.1']
    %10 = vsyncpa [#allocation3], 0
    // Predicated region
    $region2: #{tpu_custom_call.1} parent=1 // pred_check
      _
    $region3: #{tpu_custom_call.1} parent=1 // pred_check_branch
      %12 = sbr.rel (0) target = $region5
    $region4: #{tpu_custom_call.1} parent=1 // pred_region
      _
    $region5: #{tpu_custom_call.1} parent=1 // pred_fallthru
      _
    // Predicated region
    $region6: #{tpu_custom_call.1} parent=1 // pred_check
      _
    $region7: #{tpu_custom_call.1} parent=1 // pred_check_branch
      %14 = sbr.rel (0) target = $region9
    $region8: #{tpu_custom_call.1} parent=1 // pred_region
      _
    $region9: #{tpu_custom_call.1} parent=1 // pred_fallthru
      _
    // Predicated region
    $region10: #{tpu_custom_call.1} parent=1 // pred_check
      _
    $region11: #{tpu_custom_call.1} parent=1 // pred_check_branch
      %16 = sbr.rel (0) target = $region13
    $region12: #{tpu_custom_call.1} parent=1 // pred_region
      _
    $region13: #{tpu_custom_call.1} parent=1 // pred_fallthru
      _
    // Predicated region
    $region14: #{tpu_custom_call.1} parent=1 // pred_check
      _
    $region15: #{tpu_custom_call.1} parent=1 // pred_check_branch
      %18 = sbr.rel (0) target = $region17
    $region16: #{tpu_custom_call.1} parent=1 // pred_region
      _
    $region17: #{tpu_custom_call.1} parent=1 // pred_fallthru
      _
    // Predicated region
    $region18: #{tpu_custom_call.1} parent=1 // pred_check
      _
    $region19: #{tpu_custom_call.1} parent=1 // pred_check_branch
      %20 = sbr.rel (0) target = $region21
    $region20: #{tpu_custom_call.1} parent=1 // pred_region
      _
    $region21: #{tpu_custom_call.1} parent=1 // pred_fallthru
      _
    %v21 = vld [vmem:[%s0] sm:$0xff]
    %v22 = vld [vmem:[%s1] sm:$0xff]
    %v23 = vld [vmem:[%s1 + $0x8] sm:$0xff]
    %v24 = vld [vmem:[%s1 + $0x10] sm:$0xff]
    %v25 = vld [vmem:[%s1 + $0x18] sm:$0xff]
    %v26 = vld [vmem:[%s2] sm:$0x1]
    %v28 = vperm.slane %v26, 0
    %vm30 = vcmask 261120
    %v32 = vsel %vm30, %v21, 0
    %34 = vmatpush.msra.mxu0 0.0
    %35 = vmatpush.msra.mxu0 0.0
    %36 = vmatpush.msra.mxu0 0.0
    %37 = vmatpush.msra.mxu0 0.0
    %38 = vmatpush.msra.mxu0 0.0
    %39 = vmatpush.msra.mxu0 0.0
    %40 = vmatpush.msra.mxu0 0.0
    %41 = vmatpush.msra.mxu0 0.0
    %42 = vmatpush.msra.mxu0 0.0
    %43 = vmatpush.msra.mxu0 0.0
    %44 = vmatpush.msra.mxu0 0.0
    %45 = vmatpush.msra.mxu0 0.0
    %46 = vmatpush.msra.mxu0 %v25
    %47 = vmatpush.msra.mxu0 %v24
    %48 = vmatpush.msra.mxu0 %v23
    %49 = vmatpush.msra.mxu0 %v22
    %50 = vmatmul.f32.gmra.mxu0 %v32
    %v51 = vpop.f32.mrf.mxu0
    %v52 = vadd.f32 %v28, %v51
    %53 = vdwg.mxu0
    %v54 = vmax.f32 %v52, 0.0
    %v55 = vld [vmem:[%s3] sm:$0xff]
    %v56 = vld [vmem:[%s3 + $0x8] sm:$0xff]
    %v57 = vld [vmem:[%s3 + $0x10] sm:$0xff]
    %v58 = vld [vmem:[%s3 + $0x18] sm:$0xff]
    %v59 = vld [vmem:[%s4] sm:$0x1]
    %v61 = vperm.slane %v59, 0
    %v64 = vsel %vm30, %v54, 0
    %66 = vmatpush.msra.mxu0 0.0
    %67 = vmatpush.msra.mxu0 0.0
    %68 = vmatpush.msra.mxu0 0.0
    %69 = vmatpush.msra.mxu0 0.0
    %70 = vmatpush.msra.mxu0 0.0
    %71 = vmatpush.msra.mxu0 0.0
    %72 = vmatpush.msra.mxu0 0.0
    %73 = vmatpush.msra.mxu0 0.0
    %74 = vmatpush.msra.mxu0 0.0
    %75 = vmatpush.msra.mxu0 0.0
    %76 = vmatpush.msra.mxu0 0.0
    %77 = vmatpush.msra.mxu0 0.0
    %78 = vmatpush.msra.mxu0 %v58
    %79 = vmatpush.msra.mxu0 %v57
    %80 = vmatpush.msra.mxu0 %v56
    %81 = vmatpush.msra.mxu0 %v55
    %82 = vmatmul.f32.gmra.mxu0 %v64
    %v83 = vpop.f32.mrf.mxu0
    %v84 = vadd.f32 %v61, %v83
    %85 = vdwg.mxu0
    %vm86 = vcmask 64512
    %87 = vst.msk [vmem:[#allocation2] sm:$0xff] %vm86, %v84
    // Predicated region
    $region22: #{tpu_custom_call.1} parent=1 // pred_check
      _
    $region23: #{tpu_custom_call.1} parent=1 // pred_check_branch
      %89 = sbr.rel (0) target = $region25
    $region24: #{tpu_custom_call.1} parent=1 // pred_region
      %91 = vsyncadd [#allocation3], 0
      %s93 = sshll.u32 [#allocation2], 4
      %s94 = int_to_ptr.vmem [resolvable:$true] %s93
      %s95 = sshll.u32 %s5, 4
      %s96 = int_to_ptr.hbm [resolvable:$true] %s95
      %98 = dma.vmem_to_hbm [thread:$0]  %s94, 128, %s96, [#allocation3]
    $region25: #{tpu_custom_call.1} parent=1 // pred_fallthru
      _
    // Predicated region
    $region26: #{tpu_custom_call.1} parent=1 // pred_check
      _
    $region27: #{tpu_custom_call.1} parent=1 // pred_check_branch
      %100 = sbr.rel (0) target = $region29
    $region28: #{tpu_custom_call.1} parent=1 // pred_region
      %102 = dma.done [#allocation3], 128
    $region29: #{tpu_custom_call.1} parent=1 // pred_fallthru
      _
    %103 = vsyncpa [#allocation3], 1

</llo_original>
